<compile_context>
chip_gen: v7x
topology: tpu7x:2x2x1
jax: 0.10.0
libtpu: 0.0.40
codegen_flags: <defaults>
</compile_context>

<pallas_src>
import jax
import jax.numpy as jnp
from jax.experimental import pallas as pl
from jax.experimental.pallas import tpu as pltpu


def _round_up(x, m):
    return ((x + m - 1) // m) * m


def _logreg_kernel(x_ref, w_ref, b_ref, o_ref):
    # x_ref: [TILE_B, Fp] VMEM, w_ref: [1, Fp] VMEM (resident), b_ref: [1,1] SMEM
    x = x_ref[...]
    w = w_ref[...]                                   # broadcast [1,Fp] over rows
    z = jnp.sum(x * w, axis=-1, keepdims=True)       # VPU mul + XLU lane reduce
    z = z + b_ref[0, 0]                              # SMEM scalar read
    o_ref[...] = jax.nn.sigmoid(z).astype(o_ref.dtype)


def logistic_regression(x, weight, bias, *, tile_b=None):
    """x: [B, F] f32; weight: [1, F] (torch nn.Linear layout); bias: [1].

    Returns sigmoid(x @ weight.T + bias) with shape [B, 1].
    """
    B, F = x.shape
    Fp = _round_up(F, 128)                           # lane-dense feature axis

    if tile_b is None:
        # ~2 MiB per x tile buffer -> 4 MiB double-buffered: safe under the
        # default scoped VMEM on v5e (16 MiB), v6e (32 MiB) and v7x (32 MiB).
        tile_b = max(8, min(512, ((2 * 1024 * 1024) // (Fp * 4)) // 8 * 8))
    tile_b = min(tile_b, _round_up(B, 8))            # don't over-tile tiny batches
    Bp = _round_up(B, tile_b)                        # pad batch to a whole grid

    # Zero-pad: padded feature columns contribute 0 to the dot product;
    # padded batch rows are sliced off below.
    x_p = jnp.zeros((Bp, Fp), jnp.float32).at[:B, :F].set(x.astype(jnp.float32))
    w_row = jnp.zeros((1, Fp), jnp.float32).at[:, :F].set(weight.astype(jnp.float32))
    b = bias.reshape(1, 1).astype(jnp.float32)

    grid = (Bp // tile_b,)

    out = pl.pallas_call(
        _logreg_kernel,
        out_shape=jax.ShapeDtypeStruct((Bp, 1), x.dtype),
        grid_spec=pltpu.PrefetchScalarGridSpec(
            num_scalar_prefetch=0,
            grid=grid,
            in_specs=[
                # x: streamed batch tiles (double-buffered by the pipeline)
                pl.BlockSpec((tile_b, Fp), lambda i: (i, 0)),
                # weight row: same block every step -> stays resident in VMEM
                pl.BlockSpec((1, Fp), lambda i: (0, 0)),
                # bias: SMEM scalar
                pl.BlockSpec(memory_space=pltpu.MemorySpace.SMEM),
            ],
            out_specs=pl.BlockSpec((tile_b, 1), lambda i: (i, 0)),
        ),
        compiler_params=pltpu.CompilerParams(
            dimension_semantics=("parallel",),       # megacore-shard batch on v7x
        ),
        cost_estimate=pl.CostEstimate(
            flops=2 * Bp * Fp,
            transcendentals=Bp,
            bytes_accessed=4 * (Bp * Fp + Fp + Bp),
        ),
    )(x_p, w_row, b)

    return out[:B]


if __name__ == "__main__":
    key = jax.random.PRNGKey(0)
    kx, kw, kb = jax.random.split(key, 3)

    batch, n_features = 8, 32
    x = jax.random.normal(kx, (batch, n_features), dtype=jnp.float32)

    # Deterministic parameter init (matches nn.Linear shapes: weight [1, F], bias [1])
    bound = 1.0 / jnp.sqrt(n_features)
    weight = jax.random.uniform(kw, (1, n_features), minval=-bound, maxval=bound,
                                dtype=jnp.float32)
    bias = jax.random.uniform(kb, (1,), minval=-bound, maxval=bound,
                              dtype=jnp.float32)

    y = logistic_regression(x, weight, bias)
    jax.block_until_ready(y)

    # Cross-check against plain JAX reference
    y_ref = jax.nn.sigmoid(x @ weight.T + bias)
    assert y.shape == (batch, 1)
    assert jnp.allclose(y, y_ref, atol=1e-5), "mismatch vs reference"

    print("KERNEL_OK")
</pallas_src>

<mosaic_0001>
module attributes {stable_mosaic.version = 11 : i64} {
  func.func @_logreg_kernel(%arg0: i32, %arg1: memref<8x128xf32, #tpu.memory_space<vmem>>, %arg2: memref<1x128xf32, #tpu.memory_space<vmem>>, %arg3: memref<1x1xf32, #tpu.memory_space<smem>>, %arg4: memref<8x1xf32, #tpu.memory_space<vmem>>) attributes {dimension_semantics = [#tpu.dimension_semantics<parallel>], iteration_bounds = array<i64: 1>, scalar_prefetch = 0 : i64, scratch_operands = 0 : i64, tpu.core_type = #tpu.core_type<tc>, window_params = [{transform_indices = @transform_0, window_bounds = array<i64: 8, 128>}, {pipeline_mode = #tpu.pipeline_mode<synchronous>, transform_indices = @transform_1, window_bounds = array<i64: 1, 128>}, {transform_indices = @transform_2, window_bounds = array<i64: 1, 1>}, {transform_indices = @transform_3, window_bounds = array<i64: 8, 1>}]} {
    %c0 = arith.constant 0 : index
    %c0_0 = arith.constant 0 : index
    %0 = vector.load %arg1[%c0, %c0_0] : memref<8x128xf32, #tpu.memory_space<vmem>>, vector<8x128xf32>
    %c0_1 = arith.constant 0 : index
    %c0_2 = arith.constant 0 : index
    %1 = vector.load %arg2[%c0_1, %c0_2] : memref<1x128xf32, #tpu.memory_space<vmem>>, vector<1x128xf32>
    %2 = vector.broadcast %1 : vector<1x128xf32> to vector<8x128xf32>
    %3 = arith.mulf %0, %2 : vector<8x128xf32>
    %cst = arith.constant dense<0.000000e+00> : vector<8xf32>
    %4 = vector.multi_reduction <add>, %3, %cst [1] : vector<8x128xf32> to vector<8xf32>
    %5 = vector.shape_cast %4 : vector<8xf32> to vector<8x1xf32>
    %c0_3 = arith.constant 0 : index
    %c0_4 = arith.constant 0 : index
    %6 = memref.load %arg3[%c0_3, %c0_4] : memref<1x1xf32, #tpu.memory_space<smem>>
    %7 = vector.broadcast %6 : f32 to vector<8x1xf32>
    %8 = arith.addf %5, %7 : vector<8x1xf32>
    %9 = arith.negf %8 : vector<8x1xf32>
    %10 = math.exp %9 : vector<8x1xf32>
    %cst_5 = arith.constant 1.000000e+00 : f32
    %11 = vector.broadcast %cst_5 : f32 to vector<8x1xf32>
    %12 = arith.addf %11, %10 : vector<8x1xf32>
    %13 = arith.divf %11, %12 : vector<8x1xf32>
    %c0_6 = arith.constant 0 : index
    %c0_7 = arith.constant 0 : index
    %14 = vector.load %arg4[%c0_6, %c0_7] : memref<8x1xf32, #tpu.memory_space<vmem>>, vector<8x1xf32>
    tpu.vector_store %arg4[%c0_6, %c0_7], %13 {strides = array<i32>} : memref<8x1xf32, #tpu.memory_space<vmem>>, vector<8x1xf32>,
    return
  }
  func.func @transform_0(%arg0: i32) -> (i32, i32) {
    %c0_i32 = arith.constant 0 : i32
    %c0_i32_0 = arith.constant 0 : i32
    return %arg0, %c0_i32 : i32, i32
  }
  func.func @transform_1(%arg0: i32) -> (i32, i32) {
    %c0_i32 = arith.constant 0 : i32
    %c0_i32_0 = arith.constant 0 : i32
    %c0_i32_1 = arith.constant 0 : i32
    return %c0_i32, %c0_i32_0 : i32, i32
  }
  func.func @transform_2(%arg0: i32) -> (i32, i32) {
    %c0_i32 = arith.constant 0 : i32
    %c0_i32_0 = arith.constant 0 : i32
    %c0_i32_1 = arith.constant 0 : i32
    return %c0_i32, %c0_i32_0 : i32, i32
  }
  func.func @transform_3(%arg0: i32) -> (i32, i32) {
    %c0_i32 = arith.constant 0 : i32
    %c0_i32_0 = arith.constant 0 : i32
    return %arg0, %c0_i32 : i32, i32
  }
}

</mosaic_0001>

<llo_original>
// kernel: tpu_custom_call.1
$region0: #{tpu_custom_call.1}
  #allocation0 [shape = 'u32[]', space=smem, size = 0x4, offset = 0x4, fixed_abs, tag = 'smem constant byte address 0x4 - core index']
  #allocation1 [shape = 'u32[144,128]{1,0:T(1,128)}', space=vmem, size = 0x12000, scoped, tag = 'internal scratch']
  #allocation2 [shape = 'f32[1,1]{1,0:T(1,128)S(6)}', space=smem, size = 0x200, scoped, tag = 'scoped memory for tpu_custom_call.1']
  %s0 = inlined_call_operand.hbm [shape: f32[8,128], index: 0, kind: input, shape index: {}]
  %s1 = inlined_call_operand.vmem [shape: f32[1,128], index: 1, kind: input, shape index: {}]
  %s2 = inlined_call_operand.<no memory space> [shape: f32[1,1], index: 2, kind: input, shape index: {}]
  %s3 = inlined_call_operand.vmem [shape: f32[8,1], index: 3, kind: output, shape index: {}]
  %s4 = sld [smem:[#allocation0]]
  $region26: #{tpu_custom_call.1} parent=0
    _
  %s6 = ssub.s32 1, %s4
  %s7 = scalar_select 0, %s6, %s4
  %8 = sst [smem:[#allocation2]] %s2
  $region1: #{tpu_custom_call.1} parent=0
    #allocation3 [shape = 'u8[4096]{0}', space=vmem, size = 0x1000, scoped, tag = 'input window, operand 0, single buffered']
    #allocation4 [shape = 's32[1]{0}', space=sflag, size = 0x4, scoped, tag = 'scoped memory for tpu_custom_call.1']
    %9 = vsyncpa [#allocation4], 0
    // Predicated region
    $region2: #{tpu_custom_call.1} parent=1 // pred_check
      _
    $region3: #{tpu_custom_call.1} parent=1 // pred_check_branch
      %11 = sbr.rel (0) target = $region5
    $region4: #{tpu_custom_call.1} parent=1 // pred_region
      %s13 = ssub.s32 128, 128
      %14 = vsyncadd [#allocation4], %s13
      %s16 = sshll.u32 [#allocation3], 4
      %s17 = int_to_ptr.vmem [resolvable:$true] %s16
      %19 = dma.hbm_to_vmem [thread:$0]  %s0, 128, %s17, [#allocation4]
    $region5: #{tpu_custom_call.1} parent=1 // pred_fallthru
      _
    // Predicated region
    $region6: #{tpu_custom_call.1} parent=1 // pred_check
      _
    $region7: #{tpu_custom_call.1} parent=1 // pred_check_branch
      %21 = sbr.rel (0) target = $region9
    $region8: #{tpu_custom_call.1} parent=1 // pred_region
      _
    $region9: #{tpu_custom_call.1} parent=1 // pred_fallthru
      _
    // Predicated region
    $region10: #{tpu_custom_call.1} parent=1 // pred_check
      _
    $region11: #{tpu_custom_call.1} parent=1 // pred_check_branch
      %23 = sbr.rel (0) target = $region13
    $region12: #{tpu_custom_call.1} parent=1 // pred_region
      _
    $region13: #{tpu_custom_call.1} parent=1 // pred_fallthru
      _
    // Predicated region
    $region14: #{tpu_custom_call.1} parent=1 // pred_check
      _
    $region15: #{tpu_custom_call.1} parent=1 // pred_check_branch
      %25 = sbr.rel (0) target = $region17
    $region16: #{tpu_custom_call.1} parent=1 // pred_region
      %26 = dma.done [#allocation4], 128
    $region17: #{tpu_custom_call.1} parent=1 // pred_fallthru
      _
    %v27 = vld [vmem:[#allocation3] sm:$0xff]
    %v28 = vld [vmem:[%s1] sm:$0x1]
    %v30 = vlaneseq
    %v31 = vshrl.u32 %v30, 7
    %v32 = vsub.s32 0, %v31
    %v33 = vrot.slane %v28, %v32
    %v35 = vmul.f32 %v27, %v33
    %36 = vadd.xlane.f32.xlu0 %v35
    %v37 = vpop.xlane.xlu0 %36
    %s38 = sld [smem:[#allocation2]]
    %v39 = vstv %s38
    %v40 = vadd.f32 %v37, %v39
    %v41 = vxor.u32 %v40, 2147483648
    %v42 = vmul.f32 %v41, 1.442695
    %v43 = vpow.pop %v42
    %v44 = vadd.f32 %v43, 1.0
    %v45 = vrcp.pop %v44
    %v46 = vmul.f32 1.0, %v45
    %vm47 = vcmask 7168
    %48 = vst.msk [vmem:[%s3] sm:$0xff] %vm47, %v46
    // Predicated region
    $region18: #{tpu_custom_call.1} parent=1 // pred_check
      _
    $region19: #{tpu_custom_call.1} parent=1 // pred_check_branch
      %50 = sbr.rel (0) target = $region21
    $region20: #{tpu_custom_call.1} parent=1 // pred_region
      _
    $region21: #{tpu_custom_call.1} parent=1 // pred_fallthru
      _
    // Predicated region
    $region22: #{tpu_custom_call.1} parent=1 // pred_check
      _
    $region23: #{tpu_custom_call.1} parent=1 // pred_check_branch
      %52 = sbr.rel (0) target = $region25
    $region24: #{tpu_custom_call.1} parent=1 // pred_region
      _
    $region25: #{tpu_custom_call.1} parent=1 // pred_fallthru
      _
    %53 = vsyncpa [#allocation4], 1

</llo_original>
